<compile_context>
chip_gen: v7x
topology: tpu7x:2x2x1
jax: 0.10.0
libtpu: 0.0.40
codegen_flags: <defaults>
</compile_context>

<pallas_src>
import functools
import math

import jax
import jax.numpy as jnp
from jax.experimental import pallas as pl
from jax.experimental.pallas import tpu as pltpu


# --------------------------- hardware-aware config ------------------------ #

def _vmem_config():
    """(tile byte budget, scoped VMEM limit) derived from the chip's VMEM."""
    try:
        cap = pltpu.get_tpu_info().vmem_capacity_bytes
    except Exception:                      # no TPU visible / older jax
        cap = 64 * 1024 * 1024
    if cap >= 128 * 1024 * 1024:           # v5e / v6e: plenty of headroom
        return 28 * 1024 * 1024, 96 * 1024 * 1024
    return 12 * 1024 * 1024, 32 * 1024 * 1024   # v7x (64 MiB per TC)


_VMEM_BUDGET_BYTES, _VMEM_LIMIT_BYTES = _vmem_config()
_PIPELINE_MIN_BYTES = 2 * 1024 * 1024    # enforce pipeline depth above this
_LANE_TARGET = 512                       # aim for a few full 128-lane vregs/row


def _round_up(v, m):
    return ((v + m - 1) // m) * m


def _pick_fold(n_rows, n_feat, lane_target=_LANE_TARGET):
    """Fold k consecutive rows into one kernel row (lane width = k*n_feat).

    Pure row-major reshape (no transpose / copy).  Prefer k such that k*n_feat
    is a multiple of 128 so the scale pass gets unmasked full-lane stores.
    """
    if n_rows <= 1 or n_feat >= lane_target:
        return 1
    k_max = min(n_rows, max(1, lane_target // n_feat))
    divisors = [k for k in range(1, k_max + 1) if n_rows % k == 0]
    dense = [k for k in divisors if (k * n_feat) % 128 == 0]
    if dense:
        return max(dense)
    # TODO(synk): row counts with no suitable divisor (e.g. prime) fall back to
    # k=1; a body+tail split would keep the lane-dense store path without a
    # padding copy.
    return max(divisors) if divisors else 1


def _pick_row_tile(n_rows, vmem_bytes_per_row, *, min_steps=1, even_steps=False):
    """Row tile: fits the double-buffered VMEM budget, keeps pipeline depth."""
    # TODO(synk): absurdly large feature widths would need a second (column)
    # grid axis; num_features is small in practice so rows-only tiling.
    total = n_rows * max(vmem_bytes_per_row, 1)
    steps = max(1, pl.cdiv(2 * total, _VMEM_BUDGET_BYTES))   # 2x = double buffer
    if total > _PIPELINE_MIN_BYTES:
        steps = max(steps, min_steps)
    if even_steps and steps > 1:
        steps += steps % 2           # balanced megacore split on v7x
    tr = pl.cdiv(n_rows, steps)
    if tr < n_rows:
        tr = _round_up(max(tr, 1), 32)   # 32-row multiple: safe for f32/bf16/int8
    return min(tr, n_rows)


# ------------------------------- kernels --------------------------------- #

def _colsum_kernel(x_ref, sum_ref, *, rows, tr, steps, exact):
    """Per-lane (column) sums of x over the row-block axis, per parallel core."""
    c = pl.program_id(0)
    i = pl.program_id(1)

    @pl.when(i == 0)
    def _init():
        sum_ref[...] = jnp.zeros_like(sum_ref)

    x = x_ref[...].astype(jnp.float32)
    if exact:
        sum_ref[...] += jnp.sum(x, axis=0, keepdims=True)
    else:
        start = (c * steps + i) * tr

        @pl.when(start + tr <= rows)
        def _interior():                       # no masking ops on interior blocks
            sum_ref[...] += jnp.sum(x, axis=0, keepdims=True)

        @pl.when(start + tr > rows)
        def _edge():                           # ragged / clamped block
            valid = (start + jax.lax.broadcasted_iota(jnp.int32, x.shape, 0)) < rows
            sum_ref[...] += jnp.sum(jnp.where(valid, x, 0.0), axis=0, keepdims=True)


def _masked_colsum_narrow_kernel(x_ref, m_ref, sum_ref, *, rows, tr, steps, exact):
    """Per-lane sums of x * mask where the mask is a (tr, 1) int8 column."""
    c = pl.program_id(0)
    i = pl.program_id(1)

    @pl.when(i == 0)
    def _init():
        sum_ref[...] = jnp.zeros_like(sum_ref)

    x = x_ref[...].astype(jnp.float32)
    mf = (m_ref[...] != 0).astype(jnp.float32)          # (tr, 1) lane-broadcast
    if not exact:
        start = (c * steps + i) * tr
        valid = (start + jax.lax.broadcasted_iota(jnp.int32, x.shape, 0)) < rows
        x = jnp.where(valid, x, 0.0)                    # zero padded garbage rows
    sum_ref[...] += jnp.sum(x * mf, axis=0, keepdims=True)


def _masked_colsum_full_kernel(x_ref, m_ref, sum_ref, cnt_ref, *, rows, tr, steps,
                               exact):
    """Per-lane sums of x*mask and of mask for a full-width (per-feature) mask."""
    c = pl.program_id(0)
    i = pl.program_id(1)

    @pl.when(i == 0)
    def _init():
        sum_ref[...] = jnp.zeros_like(sum_ref)
        cnt_ref[...] = jnp.zeros_like(cnt_ref)

    x = x_ref[...].astype(jnp.float32)
    mf = (m_ref[...] != 0).astype(jnp.float32)
    if not exact:
        start = (c * steps + i) * tr
        valid = (start + jax.lax.broadcasted_iota(jnp.int32, x.shape, 0)) < rows
        x = jnp.where(valid, x, 0.0)
        mf = jnp.where(valid, mf, 0.0)
    sum_ref[...] += jnp.sum(x * mf, axis=0, keepdims=True)
    cnt_ref[...] += jnp.sum(mf, axis=0, keepdims=True)


def _scale_kernel(x_ref, s_ref, o_ref):
    """out = x * scale_row (scale broadcast along sublanes)."""
    o_ref[...] = (x_ref[...] * s_ref[...]).astype(o_ref.dtype)


# --------------------------- pallas wrappers ------------------------------ #

def _column_sums(x2d, mask2d=None):
    """Column sums of a 2-D view of x (rows reduced), 2-way core-split.

    mask2d: None, an int8 (rows, 1) column (narrow mask -> sums only), or an
    int8 array of x2d's shape (full mask -> sums and per-lane counts).
    Returns (sums[width], counts[width] or None) as float32.
    """
    rows, width = x2d.shape
    bpr = _round_up(width, 128) * x2d.dtype.itemsize
    narrow = mask2d is not None and mask2d.shape[1] == 1
    if mask2d is not None:
        bpr += _round_up(mask2d.shape[1], 128)           # int8, 1 byte/elt

    tr = _pick_row_tile(rows, bpr, min_steps=4)
    steps_total = pl.cdiv(rows, tr)
    n_split = 2 if steps_total >= 4 else 1               # v7x: one partial per TC
    steps = pl.cdiv(steps_total, n_split)
    exact = (n_split * steps * tr == rows)
    last_blk = steps_total - 1

    def row_map(c, i):
        # Clamp so the DMA stays in bounds; logically-OOB blocks are zeroed
        # in-kernel via the row-validity mask.
        return (jnp.minimum(c * steps + i, last_blk), 0)

    x_spec = pl.BlockSpec((tr, width), row_map)
    acc_spec = pl.BlockSpec((1, width), lambda c, i: (c, 0))   # resident per core
    grid = (n_split, steps)
    params = pltpu.CompilerParams(
        dimension_semantics=("parallel", "arbitrary"),
        vmem_limit_bytes=_VMEM_LIMIT_BYTES)

    if mask2d is None:
        cost = pl.CostEstimate(
            flops=rows * width, transcendentals=0,
            bytes_accessed=rows * width * x2d.dtype.itemsize + n_split * width * 4)
        part = pl.pallas_call(
            functools.partial(_colsum_kernel, rows=rows, tr=tr, steps=steps,
                              exact=exact),
            out_shape=jax.ShapeDtypeStruct((n_split, width), jnp.float32),
            grid=grid, in_specs=[x_spec], out_specs=acc_spec,
            compiler_params=params, cost_estimate=cost,
        )(x2d)
        return part.sum(axis=0), None

    m_spec = pl.BlockSpec((tr, mask2d.shape[1]), row_map)
    if narrow:
        cost = pl.CostEstimate(
            flops=3 * rows * width, transcendentals=0,
            bytes_accessed=rows * (width * x2d.dtype.itemsize + 1)
            + n_split * width * 4)
        part = pl.pallas_call(
            functools.partial(_masked_colsum_narrow_kernel, rows=rows, tr=tr,
                              steps=steps, exact=exact),
            out_shape=jax.ShapeDtypeStruct((n_split, width), jnp.float32),
            grid=grid, in_specs=[x_spec, m_spec], out_specs=acc_spec,
            compiler_params=params, cost_estimate=cost,
        )(x2d, mask2d)
        return part.sum(axis=0), None

    cost = pl.CostEstimate(
        flops=4 * rows * width, transcendentals=0,
        bytes_accessed=rows * width * (x2d.dtype.itemsize + 1)
        + 2 * n_split * width * 4)
    sums, cnts = pl.pallas_call(
        functools.partial(_masked_colsum_full_kernel, rows=rows, tr=tr,
                          steps=steps, exact=exact),
        out_shape=(jax.ShapeDtypeStruct((n_split, width), jnp.float32),
                   jax.ShapeDtypeStruct((n_split, width), jnp.float32)),
        grid=grid, in_specs=[x_spec, m_spec], out_specs=(acc_spec, acc_spec),
        compiler_params=params, cost_estimate=cost,
    )(x2d, mask2d)
    return sums.sum(axis=0), cnts.sum(axis=0)


def _apply_scale(x2d, scale_row):
    """out[r, :] = x2d[r, :] * scale_row  (lane-dense elementwise pass)."""
    rows, width = x2d.shape
    bpr = 2 * _round_up(width, 128) * x2d.dtype.itemsize      # in + out tiles
    tr = _pick_row_tile(rows, bpr, min_steps=8, even_steps=True)
    grid = (pl.cdiv(rows, tr),)
    cost = pl.CostEstimate(
        flops=rows * width, transcendentals=0,
        bytes_accessed=2 * rows * width * x2d.dtype.itemsize
        + width * scale_row.dtype.itemsize)
    return pl.pallas_call(
        _scale_kernel,
        out_shape=jax.ShapeDtypeStruct((rows, width), x2d.dtype),
        grid=grid,
        in_specs=[pl.BlockSpec((tr, width), lambda i: (i, 0)),
                  pl.BlockSpec((1, width), lambda i: (0, 0))],
        out_specs=pl.BlockSpec((tr, width), lambda i: (i, 0)),
        compiler_params=pltpu.CompilerParams(
            dimension_semantics=("parallel",),
            vmem_limit_bytes=_VMEM_LIMIT_BYTES),
        cost_estimate=cost,
    )(x2d, scale_row)


# -------------------------------- modules --------------------------------- #

class PositiveTensorJax:
    """Minimal JAX port of PositiveTensor (get_value only)."""

    def __init__(self, initial_val, learnable=True, softplus=True):
        val = jnp.asarray(initial_val, jnp.float32)
        self.learnable = learnable
        self.softplus = softplus
        if learnable:
            self._untransformed = (jnp.log(jnp.expm1(val)) if softplus
                                   else jnp.log(val))
        else:
            self._value = val

    def get_value(self):
        if self.learnable:
            if self.softplus:
                return jax.nn.softplus(self._untransformed)
            return jnp.exp(self._untransformed)
        return self._value


class PositiveBatchNormPallas:
    """JAX/Pallas equivalent of PositiveBatchNorm's forward pass."""

    def __init__(self, num_features, dim=-1, momentum=0.1, affine=True,
                 track_running_stats=True):
        self.num_features = num_features
        self.dim = dim
        self.momentum = momentum
        self.affine = affine
        self.track_running_stats = track_running_stats
        self.weight = (PositiveTensorJax(jnp.ones((num_features,)))
                       if affine else None)
        # TODO(synk): running stats / EMA / num_batches_tracked are stateful
        # host-side bookkeeping on tiny C-length vectors; this Python-side
        # state also means the full __call__ cannot be jax.jit'd as-is.
        self.running_mean = None
        self.num_batches_tracked = 0 if track_running_stats else None
        self.training = True

    def train(self):
        self.training = True
        return self

    def eval(self):
        self.training = False
        return self

    def __call__(self, x, mask=None):
        ndim = x.ndim
        if not -ndim <= self.dim < ndim:
            raise ValueError('dim out of range')
        dim = self.dim % ndim
        if x.shape[dim] != self.num_features:
            raise ValueError('Input tensor has incorrect number of features.')
        if dim != ndim - 1:
            # TODO(synk): non-last feature dims not implemented; the reference
            # module's own `input / mean` broadcast only lines up when the
            # feature dim is the last dim.
            raise NotImplementedError('kernel assumes the feature dim is last')

        c = self.num_features
        rows = int(math.prod(x.shape[:-1])) if ndim > 1 else 1

        narrow_mask = None   # (rows, 1) int8: mask with no feature dim
        full_mask = None     # x-shaped int8: mask carries the feature dim
        if mask is not None:
            if x.ndim - mask.ndim == 1:
                mask = jnp.expand_dims(mask, dim)
            if mask.ndim != x.ndim:
                raise ValueError('Mask tensor has incorrect number of dimensions.')
            if not (mask.shape[:dim] == x.shape[:dim]
                    and mask.shape[dim + 1:] == x.shape[dim + 1:]):
                raise ValueError('Mask tensor has incorrect shape.')
            if mask.shape[dim] == 1:
                narrow_mask = (mask != 0).astype(jnp.int8).reshape(rows, 1)
            elif mask.shape[dim] == c:
                full_mask = (mask != 0).astype(jnp.int8)
            else:
                raise ValueError('Mask tensor has incorrect shape.')

        # Lane-dense 2-D view: fold k rows per kernel row (pure reshape).
        k = _pick_fold(rows, c)
        width = k * c
        x2d = x.reshape(rows // k, width)

        # --- mean (mirrors the torch control flow) --- #
        mean = None
        if self.training or self.running_mean is None:
            if mask is None:
                sums, _ = _column_sums(x2d)
                mean = sums.reshape(k, c).sum(axis=0) / float(rows)
            elif narrow_mask is not None:
                # No mask broadcast: per-feature counts are all mask.sum();
                # the kernel only reads x (+1 byte/row of int8 mask).
                # NOTE: an all-zero mask yields inf/NaN, matching the reference.
                sums, _ = _column_sums(x.reshape(rows, c), narrow_mask)
                count = narrow_mask.astype(jnp.float32).sum()
                mean = sums / count
            else:
                sums, cnts = _column_sums(x2d, full_mask.reshape(rows // k, width))
                mean = (sums.reshape(k, c).sum(axis=0)
                        / cnts.reshape(k, c).sum(axis=0))

        if self.training:
            if self.track_running_stats:
                eaf = 0.0 if self.momentum is None else self.momentum
                if self.num_batches_tracked is not None:
                    self.num_batches_tracked += 1
                    eaf = (1.0 / float(self.num_batches_tracked)
                           if self.momentum is None else self.momentum)
                if self.running_mean is None:
                    self.running_mean = mean
                else:
                    self.running_mean = (eaf * mean
                                         + (1.0 - eaf) * self.running_mean)
        elif self.running_mean is not None:
            mean = self.running_mean

        # --- out = x / mean [* weight], fused into one per-lane scale --- #
        scale = (self.weight.get_value() / mean) if self.affine else (1.0 / mean)
        s_dtype = jnp.bfloat16 if x.dtype == jnp.bfloat16 else jnp.float32
        scale_row = jnp.tile(scale.astype(s_dtype), k).reshape(1, width)

        y2d = _apply_scale(x2d, scale_row)
        return y2d.reshape(x.shape)


# --------------------------------- main ------------------------------------ #

if __name__ == "__main__":
    key = jax.random.PRNGKey(0)
    kx, km, kf = jax.random.split(key, 3)

    # "batch_shape x num_features" input with the feature dim last.
    B, T, H, C = 4, 8, 16, 32
    x = jax.random.uniform(kx, (B, T, H, C), jnp.float32, minval=0.5, maxval=2.0)
    mask = jax.random.uniform(km, (B, T, H)) > 0.3           # feature dim omitted
    mask_full = jax.random.uniform(kf, (B, T, H, C)) > 0.3   # per-feature mask

    bn = PositiveBatchNormPallas(num_features=C, dim=-1)
    y_train = bn(x)                 # training, unmasked mean (+ stats update)
    y_masked = bn(x, mask=mask)     # training, masked mean (narrow mask path)
    y_eval = bn.eval()(x)           # eval: uses the tracked running mean

    bn2 = PositiveBatchNormPallas(num_features=C, dim=-1)
    y_full = bn2(x, mask=mask_full)  # full-width mask path
    jax.block_until_ready((y_train, y_masked, y_eval, y_full))

    # Pure-JAX references mirroring the torch forward.
    w = jax.nn.softplus(jnp.log(jnp.expm1(jnp.ones((C,)))))   # PositiveTensor -> 1.0
    dims = (0, 1, 2)
    mean_full = x.mean(axis=dims)
    ref_train = x / mean_full * w
    mf = mask[..., None].astype(jnp.float32)
    mean_masked = (x * mf).sum(axis=dims) / mf.sum(axis=dims)
    ref_masked = x / mean_masked * w
    run_mean = 0.1 * mean_masked + 0.9 * mean_full   # EMA after two training calls
    ref_eval = x / run_mean * w
    mff = mask_full.astype(jnp.float32)
    mean_f = (x * mff).sum(axis=dims) / mff.sum(axis=dims)
    ref_full = x / mean_f * w

    assert jnp.allclose(y_train, ref_train, rtol=1e-5, atol=1e-5)
    assert jnp.allclose(y_masked, ref_masked, rtol=1e-5, atol=1e-5)
    assert jnp.allclose(y_eval, ref_eval, rtol=1e-5, atol=1e-5)
    assert jnp.allclose(y_full, ref_full, rtol=1e-5, atol=1e-5)
    assert jnp.allclose(bn.running_mean, run_mean, rtol=1e-5, atol=1e-5)

    # --- extra checks: shrink the VMEM budget so the 2-way core split, the
    # clamped out-of-range blocks and the ragged edge paths are exercised. ---
    _orig_budget, _orig_pipe = _VMEM_BUDGET_BYTES, _PIPELINE_MIN_BYTES
    _VMEM_BUDGET_BYTES, _PIPELINE_MIN_BYTES = 64 * 1024, 0
    kr1, kr2 = jax.random.split(jax.random.PRNGKey(1))
    xr = jax.random.normal(kr1, (1040, 256), jnp.float32)
    s, _ = _column_sums(xr)
    assert jnp.allclose(s, xr.sum(axis=0), rtol=1e-4, atol=1e-2)
    mr = (jax.random.uniform(kr2, (1040, 1)) > 0.5).astype(jnp.int8)
    sm, _ = _column_sums(xr, mr)
    assert jnp.allclose(sm, (xr * mr).sum(axis=0), rtol=1e-4, atol=1e-2)
    srow = jnp.linspace(0.5, 2.0, 256, dtype=jnp.float32).reshape(1, 256)
    ys = _apply_scale(xr[:1000], srow)
    assert jnp.allclose(ys, xr[:1000] * srow, rtol=1e-6, atol=1e-6)
    _VMEM_BUDGET_BYTES, _PIPELINE_MIN_BYTES = _orig_budget, _orig_pipe

    print("KERNEL_OK")
</pallas_src>

<mosaic_0001>
module attributes {stable_mosaic.version = 11 : i64} {
  func.func @_colsum_kernel(%arg0: i32, %arg1: i32, %arg2: memref<32x512xf32, #tpu.memory_space<vmem>>, %arg3: memref<1x512xf32, #tpu.memory_space<vmem>>) attributes {dimension_semantics = [#tpu.dimension_semantics<parallel>, #tpu.dimension_semantics<arbitrary>], iteration_bounds = array<i64: 1, 1>, scalar_prefetch = 0 : i64, scratch_operands = 0 : i64, tpu.core_type = #tpu.core_type<tc>, window_params = [{transform_indices = @transform_0, window_bounds = array<i64: 32, 512>}, {transform_indices = @transform_1, window_bounds = array<i64: 1, 512>}]} {
    %c0_i32 = arith.constant 0 : i32
    %0 = arith.cmpi eq, %arg1, %c0_i32 : i32
    %1 = arith.extui %0 : i1 to i32
    %c0_i32_0 = arith.constant 0 : i32
    %2 = arith.cmpi ne, %1, %c0_i32_0 : i32
    scf.if %2 {
      %cst_6 = arith.constant 0.000000e+00 : f32
      %9 = vector.broadcast %cst_6 : f32 to vector<1x512xf32>
      %c0_7 = arith.constant 0 : index
      %c0_8 = arith.constant 0 : index
      %10 = vector.load %arg3[%c0_7, %c0_8] : memref<1x512xf32, #tpu.memory_space<vmem>>, vector<1x512xf32>
      tpu.vector_store %arg3[%c0_7, %c0_8], %9 {strides = array<i32>} : memref<1x512xf32, #tpu.memory_space<vmem>>, vector<1x512xf32>,
    } else {
    }
    %c0 = arith.constant 0 : index
    %c0_1 = arith.constant 0 : index
    %3 = vector.load %arg2[%c0, %c0_1] : memref<32x512xf32, #tpu.memory_space<vmem>>, vector<32x512xf32>
    %c0_2 = arith.constant 0 : index
    %c0_3 = arith.constant 0 : index
    %4 = vector.load %arg3[%c0_2, %c0_3] : memref<1x512xf32, #tpu.memory_space<vmem>>, vector<1x512xf32>
    %cst = arith.constant dense<0.000000e+00> : vector<512xf32>
    %5 = vector.multi_reduction <add>, %3, %cst [0] : vector<32x512xf32> to vector<512xf32>
    %6 = vector.shape_cast %5 : vector<512xf32> to vector<1x512xf32>
    %7 = arith.addf %4, %6 : vector<1x512xf32>
    %c0_4 = arith.constant 0 : index
    %c0_5 = arith.constant 0 : index
    %8 = vector.load %arg3[%c0_4, %c0_5] : memref<1x512xf32, #tpu.memory_space<vmem>>, vector<1x512xf32>
    tpu.vector_store %arg3[%c0_4, %c0_5], %7 {strides = array<i32>} : memref<1x512xf32, #tpu.memory_space<vmem>>, vector<1x512xf32>,
    return
  }
  func.func @transform_0(%arg0: i32, %arg1: i32) -> (i32, i32) {
    %c1_i32 = arith.constant 1 : i32
    %0 = arith.muli %arg0, %c1_i32 : i32
    %1 = arith.addi %0, %arg1 : i32
    %c0_i32 = arith.constant 0 : i32
    %2 = arith.minsi %1, %c0_i32 : i32
    %c0_i32_0 = arith.constant 0 : i32
    %c0_i32_1 = arith.constant 0 : i32
    return %2, %c0_i32_0 : i32, i32
  }
  func.func @transform_1(%arg0: i32, %arg1: i32) -> (i32, i32) {
    %c0_i32 = arith.constant 0 : i32
    %c0_i32_0 = arith.constant 0 : i32
    return %arg0, %c0_i32 : i32, i32
  }
}

</mosaic_0001>

<llo_original>
// kernel: tpu_custom_call.1
$region0: #{tpu_custom_call.1}
  #allocation0 [shape = 'u32[]', space=smem, size = 0x4, offset = 0x4, fixed_abs, tag = 'smem constant byte address 0x4 - core index']
  #allocation1 [shape = 'u32[144,128]{1,0:T(1,128)}', space=vmem, size = 0x12000, scoped, tag = 'internal scratch']
  %s0 = inlined_call_operand.hbm [shape: f32[32,512], index: 0, kind: input, shape index: {}]
  %s1 = inlined_call_operand.hbm [shape: f32[1,512], index: 1, kind: output, shape index: {}]
  %s2 = sld [smem:[#allocation0]]
  $region22: #{tpu_custom_call.1} parent=0
    _
  %s4 = ssub.s32 1, %s2
  %s5 = scalar_select 0, %s4, %s2
  $region1: #{tpu_custom_call.1} parent=0
    #allocation2 [shape = 'u8[65536]{0}', space=vmem, size = 0x10000, scoped, tag = 'input window, operand 0, single buffered']
    #allocation3 [shape = 's32[1]{0}', space=sflag, size = 0x4, scoped, tag = 'scoped memory for tpu_custom_call.1']
    #allocation4 [shape = 's32[1]{0}', space=sflag, size = 0x4, scoped, tag = 'scoped memory for tpu_custom_call.1']
    #allocation5 [shape = 'u8[2048]{0}', space=vmem, size = 0x800, scoped, tag = 'output window, operand 0, single buffered']
    %6 = vsyncpa [#allocation3], 0
    %7 = vsyncpa [#allocation4], 0
    // Predicated region
    $region2: #{tpu_custom_call.1} parent=1 // pred_check
      _
    $region3: #{tpu_custom_call.1} parent=1 // pred_check_branch
      %9 = sbr.rel (0) target = $region5
    $region4: #{tpu_custom_call.1} parent=1 // pred_region
      %s10 = sadd.s32 0, 0
      %p11 = scmp.lt.s32.totalorder %s10, 0
      %s12 = scalar_select %p11, %s10, 0
      %s13 = smul.u32 4, %s12
      %s15 = ssub.s32 2048, 2048
      %16 = vsyncadd [#allocation3], %s15
      %s17 = smul.addr %s13, 4
      %s18 = smul.addr %s17, 128
      %s19 = scalar_lea.hbm %s0, %s18
      %s20 = sshll.u32 [#allocation2], 4
      %s21 = int_to_ptr.vmem [resolvable:$true] %s20
      %26 = dma.hbm_to_vmem [thread:$0]  %s19, 2048, %s21, [#allocation3], 512, 512, 32
    $region5: #{tpu_custom_call.1} parent=1 // pred_fallthru
      _
    // Predicated region
    $region6: #{tpu_custom_call.1} parent=1 // pred_check
      _
    $region7: #{tpu_custom_call.1} parent=1 // pred_check_branch
      %28 = sbr.rel (0) target = $region9
    $region8: #{tpu_custom_call.1} parent=1 // pred_region
      %29 = dma.done [#allocation3], 2048
    $region9: #{tpu_custom_call.1} parent=1 // pred_fallthru
      _
    %s30 = sadd.s32 0, 0
    %p31 = scmp.lt.s32.totalorder %s30, 0
    %s32 = scalar_select %p31, %s30, 0
    %s33 = smul.u32 4, %s32
    %p34 = scmp.eq.s32.totalorder 0, 0
    // Predicated region
    $region10: #{tpu_custom_call.1} parent=1 // pred_check
      %p35 = pneg %p34
    $region11: #{tpu_custom_call.1} parent=1 // pred_check_branch
      %37 = sbr.rel (%p35) target = $region13
    $region12: #{tpu_custom_call.1} parent=1 // pred_region
      %v38 = vlaneseq
      %vm39 = vcmp.ge.s32.totalorder %v38, 0
      %vm40 = vcmp.lt.s32.totalorder %v38, 512
      %vm41 = vmand %vm39, %vm40
      %42 = vst.msk [vmem:[#allocation5] sm:$0xf] %vm41, 0.0
    $region13: #{tpu_custom_call.1} parent=1 // pred_fallthru
      _
    %v43 = vld [vmem:[#allocation2] sm:$0xff]
    %v44 = vld [vmem:[#allocation2 + $0x8] sm:$0xff]
    %v45 = vld [vmem:[#allocation2 + $0x10] sm:$0xff]
    %v46 = vld [vmem:[#allocation2 + $0x18] sm:$0xff]
    %v47 = vld [vmem:[#allocation2 + $0x20] sm:$0xff]
    %v48 = vld [vmem:[#allocation2 + $0x28] sm:$0xff]
    %v49 = vld [vmem:[#allocation2 + $0x30] sm:$0xff]
    %v50 = vld [vmem:[#allocation2 + $0x38] sm:$0xff]
    %v51 = vld [vmem:[#allocation2 + $0x40] sm:$0xff]
    %v52 = vld [vmem:[#allocation2 + $0x48] sm:$0xff]
    %v53 = vld [vmem:[#allocation2 + $0x50] sm:$0xff]
    %v54 = vld [vmem:[#allocation2 + $0x58] sm:$0xff]
    %v55 = vld [vmem:[#allocation2 + $0x60] sm:$0xff]
    %v56 = vld [vmem:[#allocation2 + $0x68] sm:$0xff]
    %v57 = vld [vmem:[#allocation2 + $0x70] sm:$0xff]
    %v58 = vld [vmem:[#allocation2 + $0x78] sm:$0xff]
    %v59 = vld [vmem:[#allocation5] sm:$0xf]
    %v60 = vadd.f32 %v43, %v47
    %v61 = vadd.f32 %v60, %v51
    %v62 = vadd.f32 %v61, %v55
    %v63 = vrot.slane %v62, 4
    %v64 = vadd.f32 %v62, %v63
    %v65 = vrot.slane %v64, 2
    %v66 = vadd.f32 %v64, %v65
    %v67 = vrot.slane %v66, 1
    %v68 = vadd.f32 %v66, %v67
    %v69 = vadd.f32 %v44, %v48
    %v70 = vadd.f32 %v69, %v52
    %v71 = vadd.f32 %v70, %v56
    %v72 = vrot.slane %v71, 4
    %v73 = vadd.f32 %v71, %v72
    %v74 = vrot.slane %v73, 2
    %v75 = vadd.f32 %v73, %v74
    %v76 = vrot.slane %v75, 1
    %v77 = vadd.f32 %v75, %v76
    %v78 = vadd.f32 %v45, %v49
    %v79 = vadd.f32 %v78, %v53
    %v80 = vadd.f32 %v79, %v57
    %v81 = vrot.slane %v80, 4
    %v82 = vadd.f32 %v80, %v81
    %v83 = vrot.slane %v82, 2
    %v84 = vadd.f32 %v82, %v83
    %v85 = vrot.slane %v84, 1
    %v86 = vadd.f32 %v84, %v85
    %v87 = vadd.f32 %v46, %v50
    %v88 = vadd.f32 %v87, %v54
    %v89 = vadd.f32 %v88, %v58
    %v90 = vrot.slane %v89, 4
    %v91 = vadd.f32 %v89, %v90
    %v92 = vrot.slane %v91, 2
    %v93 = vadd.f32 %v91, %v92
    %v94 = vrot.slane %v93, 1
    %v95 = vadd.f32 %v93, %v94
    %v100 = vcombine.low %v68, %v77
    %v101 = vcombine.low %v86, %v95
    %v103 = vunpack.c.l.s4 1966171168
    %v104 = vunpack.c.0.s8 %v103
    %v105 = vlaneseq
    %v106 = vshrl.u32 %v105, 7
    %v107 = vsub.s32 %v104, %v106
    %v108 = vrot.slane %v100, %v107
    %v110 = vunpack.c.l.s4 1966171168
    %v111 = vunpack.c.0.s8 %v110
    %v112 = vlaneseq
    %v113 = vshrl.u32 %v112, 7
    %v114 = vsub.s32 %v111, %v113
    %v115 = vrot.slane %v101, %v114
    %v116 = vcombine.low %v108, %v115
    %v118 = vunpack.c.l.s4 1966171168
    %v119 = vunpack.c.0.s8 %v118
    %v120 = vlaneseq
    %v121 = vshrl.u32 %v120, 7
    %v122 = vsub.s32 %v119, %v121
    %v123 = vrot.slane %v116, %v122
    %v125 = vadd.f32 %v59, %v123
    %v126 = vlaneseq
    %vm127 = vcmp.ge.s32.totalorder %v126, 0
    %vm128 = vcmp.lt.s32.totalorder %v126, 512
    %vm129 = vmand %vm127, %vm128
    %130 = vst.msk [vmem:[#allocation5] sm:$0xf] %vm129, %v125
    // Predicated region
    $region14: #{tpu_custom_call.1} parent=1 // pred_check
      _
    $region15: #{tpu_custom_call.1} parent=1 // pred_check_branch
      %132 = sbr.rel (0) target = $region17
    $region16: #{tpu_custom_call.1} parent=1 // pred_region
      %s134 = ssub.s32 64, 64
      %135 = vsyncadd [#allocation4], %s134
      %s137 = sshll.u32 [#allocation5], 4
      %s138 = int_to_ptr.vmem [resolvable:$true] %s137
      %140 = dma.vmem_to_hbm [thread:$0]  %s138, 64, %s1, [#allocation4]
    $region17: #{tpu_custom_call.1} parent=1 // pred_fallthru
      _
    // Predicated region
    $region18: #{tpu_custom_call.1} parent=1 // pred_check
      _
    $region19: #{tpu_custom_call.1} parent=1 // pred_check_branch
      %142 = sbr.rel (0) target = $region21
    $region20: #{tpu_custom_call.1} parent=1 // pred_region
      %143 = dma.done [#allocation4], 64
    $region21: #{tpu_custom_call.1} parent=1 // pred_fallthru
      _
    %144 = vsyncpa [#allocation3], 1
    %145 = vsyncpa [#allocation4], 1

</llo_original>
